<compile_context>
chip_gen: v7x
topology: tpu7x:2x2x1
jax: 0.10.0
libtpu: 0.0.40
codegen_flags: <defaults>
</compile_context>

<pallas_src>
import jax
import jax.numpy as jnp
from jax.experimental import pallas as pl
from jax.experimental.pallas import tpu as pltpu


def _fc_kernel(x_ref, w_ref, b_ref, o_ref, acc_ref):
    # x_ref:   (TK, TM)       input channels x spatial tile (lane-dense)
    # w_ref:   (C_out, TK)    weight slab (resident; constant index_map)
    # b_ref:   (C_out, 1)     bias
    # o_ref:   (C_out, TM)    output tile (lane-dense)
    # acc_ref: (C_out, TM)    f32 accumulator scratch
    k = pl.program_id(2)

    @pl.when(k == 0)
    def _():
        acc_ref[...] = jnp.zeros_like(acc_ref)

    acc_ref[...] += jnp.dot(w_ref[...], x_ref[...],
                            preferred_element_type=jnp.float32)

    @pl.when(k == pl.num_programs(2) - 1)
    def _():
        o_ref[...] = (acc_ref[...] + b_ref[...]).astype(o_ref.dtype)


def _choose_tiles(hw, c_in, c_out, itemsize, *, tm_target, vmem_budget):
    # Spatial (lane) tile: full extent if small, else the large target
    # (a multiple of 128).
    tm = hw if hw <= tm_target else tm_target

    # K (C_in) tile: only tile the reduction for large, nicely divisible C_in;
    # otherwise keep the full channel dim in one block.
    tk = 512 if (c_in > 2048 and c_in % 512 == 0) else c_in

    def est(tm_):
        stream = 2 * (tk * tm_ + c_out * tm_) * itemsize   # double-buffered x/out
        resident = 2 * (c_out * tk + c_out) * itemsize      # weight + bias
        acc = c_out * tm_ * 4                               # f32 accumulator
        return stream + resident + acc + (1 << 20)          # + slack

    # Shrink the spatial tile if the working set would blow the VMEM budget
    # (keeps tm a multiple of 128).
    while tm > 128 and tm % 256 == 0 and est(tm) > vmem_budget:
        tm //= 2
    return tm, tk, est(tm)


def fc_forward(x_nchw, weight, bias, *, tm=512):
    """1x1 conv with bias (== FC over the channel dim).

    x_nchw : (B, C_in, H, W)
    weight : (C_out, C_in, 1, 1)   (PyTorch Conv2d layout)
    bias   : (C_out,)
    returns: (B, C_out, H, W)
    """
    B, C_in, H, W = x_nchw.shape
    C_out = weight.shape[0]
    HW = H * W

    # All reshapes below are free (contiguous views) — no HBM transposes.
    x3d = x_nchw.reshape(B, C_in, HW)
    w2d = weight.reshape(C_out, C_in)
    b2d = bias.reshape(C_out, 1)

    itemsize = jnp.dtype(x_nchw.dtype).itemsize
    tm_eff, tk, vmem_est = _choose_tiles(
        HW, C_in, C_out, itemsize, tm_target=tm, vmem_budget=40 << 20)
    if HW > tm_eff:
        assert tm_eff % 128 == 0, "spatial tile must be lane-aligned"
    assert C_in % tk == 0

    n_m = pl.cdiv(HW, tm_eff)        # cdiv grid: spatial tail handled by Pallas
    n_k = C_in // tk
    # Explicit VMEM limit: >= v5e's tiny scoped default, <= v7x physical VMEM.
    vmem_limit = int(min(max(vmem_est, 32 << 20), 56 << 20))

    out3d = pl.pallas_call(
        _fc_kernel,
        out_shape=jax.ShapeDtypeStruct((B, C_out, HW), x_nchw.dtype),
        grid_spec=pltpu.PrefetchScalarGridSpec(
            num_scalar_prefetch=0,
            grid=(B, n_m, n_k),
            in_specs=[
                # x: batch squeezed, (C_in-tile, spatial-tile), lane-dense
                pl.BlockSpec((None, tk, tm_eff), lambda b, j, k: (b, k, j)),
                # weight: resident across the spatial axis, tiled along K
                pl.BlockSpec((C_out, tk), lambda b, j, k: (0, k)),
                # bias: fully resident
                pl.BlockSpec((C_out, 1), lambda b, j, k: (0, 0)),
            ],
            out_specs=pl.BlockSpec((None, C_out, tm_eff),
                                   lambda b, j, k: (b, 0, j)),
            scratch_shapes=[pltpu.VMEM((C_out, tm_eff), jnp.float32)],
        ),
        compiler_params=pltpu.CompilerParams(
            dimension_semantics=("parallel", "parallel", "arbitrary"),
            vmem_limit_bytes=vmem_limit,
        ),
    )(x3d, w2d, b2d)

    return out3d.reshape(B, C_out, H, W)


if __name__ == "__main__":
    key = jax.random.PRNGKey(0)
    kx, kw, kb = jax.random.split(key, 3)

    B, C_in, C_out, Hs, Ws = 2, 4, 8, 16, 16

    x = jax.random.normal(kx, (B, C_in, Hs, Ws), dtype=jnp.float32)
    # Deterministic params (PyTorch-like uniform init bound = 1/sqrt(fan_in))
    bound = 1.0 / jnp.sqrt(C_in * 1.0)
    weight = jax.random.uniform(kw, (C_out, C_in, 1, 1), minval=-bound,
                                maxval=bound, dtype=jnp.float32)
    bias = jax.random.uniform(kb, (C_out,), minval=-bound, maxval=bound,
                              dtype=jnp.float32)

    out = fc_forward(x, weight, bias)
    jax.block_until_ready(out)

    # Correctness check against plain-JAX reference
    ref = jnp.einsum("bchw,oc->bohw", x, weight.reshape(C_out, C_in)) \
          + bias[None, :, None, None]
    assert out.shape == (B, C_out, Hs, Ws)
    assert jnp.allclose(out, ref, atol=1e-5, rtol=1e-5)

    print("KERNEL_OK")
</pallas_src>

<mosaic_0001>
module attributes {stable_mosaic.version = 11 : i64} {
  func.func @_fc_kernel(%arg0: i32, %arg1: i32, %arg2: i32, %arg3: memref<1x4x256xf32, #tpu.memory_space<vmem>>, %arg4: memref<8x4xf32, #tpu.memory_space<vmem>>, %arg5: memref<8x1xf32, #tpu.memory_space<vmem>>, %arg6: memref<1x8x256xf32, #tpu.memory_space<vmem>>, %arg7: memref<8x256xf32, #tpu.memory_space<vmem>>) attributes {dimension_semantics = [#tpu.dimension_semantics<parallel>, #tpu.dimension_semantics<parallel>, #tpu.dimension_semantics<arbitrary>], iteration_bounds = array<i64: 2, 1, 1>, scalar_prefetch = 0 : i64, scratch_operands = 1 : i64, tpu.core_type = #tpu.core_type<tc>, window_params = [{transform_indices = @transform_0, window_bounds = array<i64: 1, 4, 256>}, {transform_indices = @transform_1, window_bounds = array<i64: 8, 4>}, {pipeline_mode = #tpu.pipeline_mode<synchronous>, transform_indices = @transform_2, window_bounds = array<i64: 8, 1>}, {transform_indices = @transform_3, window_bounds = array<i64: 1, 8, 256>}]} {
    %c0_i32 = arith.constant 0 : i32
    %0 = arith.cmpi eq, %arg2, %c0_i32 : i32
    %1 = arith.extui %0 : i1 to i32
    %c0_i32_0 = arith.constant 0 : i32
    %2 = arith.cmpi ne, %1, %c0_i32_0 : i32
    scf.if %2 {
      %cst_11 = arith.constant 0.000000e+00 : f32
      %13 = vector.broadcast %cst_11 : f32 to vector<8x256xf32>
      %c0_12 = arith.constant 0 : index
      %c0_13 = arith.constant 0 : index
      %14 = vector.load %arg7[%c0_12, %c0_13] : memref<8x256xf32, #tpu.memory_space<vmem>>, vector<8x256xf32>
      tpu.vector_store %arg7[%c0_12, %c0_13], %13 {strides = array<i32>} : memref<8x256xf32, #tpu.memory_space<vmem>>, vector<8x256xf32>,
    } else {
    }
    %c0 = arith.constant 0 : index
    %c0_1 = arith.constant 0 : index
    %3 = vector.load %arg7[%c0, %c0_1] : memref<8x256xf32, #tpu.memory_space<vmem>>, vector<8x256xf32>
    %c0_2 = arith.constant 0 : index
    %c0_3 = arith.constant 0 : index
    %4 = vector.load %arg4[%c0_2, %c0_3] : memref<8x4xf32, #tpu.memory_space<vmem>>, vector<8x4xf32>
    %c0_4 = arith.constant 0 : index
    %c0_5 = arith.constant 0 : index
    %c0_6 = arith.constant 0 : index
    %5 = vector.load %arg3[%c0_4, %c0_5, %c0_6] : memref<1x4x256xf32, #tpu.memory_space<vmem>>, vector<1x4x256xf32>
    %6 = vector.shape_cast %5 : vector<1x4x256xf32> to vector<4x256xf32>
    %cst = arith.constant dense<0.000000e+00> : vector<8x256xf32>
    %7 = tpu.matmul %4, %6, %cst {dimension_numbers = #tpu.dot_dimension_numbers<[1], [0], [0], [1], [0, 0, 1, 1], [], []>} : vector<8x4xf32>, vector<4x256xf32>, vector<8x256xf32> -> vector<8x256xf32>
    %8 = arith.addf %3, %7 : vector<8x256xf32>
    %c0_7 = arith.constant 0 : index
    %c0_8 = arith.constant 0 : index
    %9 = vector.load %arg7[%c0_7, %c0_8] : memref<8x256xf32, #tpu.memory_space<vmem>>, vector<8x256xf32>
    tpu.vector_store %arg7[%c0_7, %c0_8], %8 {strides = array<i32>} : memref<8x256xf32, #tpu.memory_space<vmem>>, vector<8x256xf32>,
    %c0_i32_9 = arith.constant 0 : i32
    %10 = arith.cmpi eq, %arg2, %c0_i32_9 : i32
    %11 = arith.extui %10 : i1 to i32
    %c0_i32_10 = arith.constant 0 : i32
    %12 = arith.cmpi ne, %11, %c0_i32_10 : i32
    scf.if %12 {
      %c0_11 = arith.constant 0 : index
      %c0_12 = arith.constant 0 : index
      %13 = vector.load %arg7[%c0_11, %c0_12] : memref<8x256xf32, #tpu.memory_space<vmem>>, vector<8x256xf32>
      %c0_13 = arith.constant 0 : index
      %c0_14 = arith.constant 0 : index
      %14 = vector.load %arg5[%c0_13, %c0_14] : memref<8x1xf32, #tpu.memory_space<vmem>>, vector<8x1xf32>
      %15 = vector.broadcast %14 : vector<8x1xf32> to vector<8x256xf32>
      %16 = arith.addf %13, %15 : vector<8x256xf32>
      %c0_15 = arith.constant 0 : index
      %c0_16 = arith.constant 0 : index
      %c0_17 = arith.constant 0 : index
      %17 = vector.load %arg6[%c0_15, %c0_16, %c0_17] : memref<1x8x256xf32, #tpu.memory_space<vmem>>, vector<1x8x256xf32>
      %18 = vector.shape_cast %17 : vector<1x8x256xf32> to vector<8x256xf32>
      %19 = vector.shape_cast %16 : vector<8x256xf32> to vector<1x8x256xf32>
      tpu.vector_store %arg6[%c0_15, %c0_16, %c0_17], %19 {strides = array<i32>} : memref<1x8x256xf32, #tpu.memory_space<vmem>>, vector<1x8x256xf32>,
    } else {
    }
    return
  }
  func.func @transform_0(%arg0: i32, %arg1: i32, %arg2: i32) -> (i32, i32, i32) {
    %c0_i32 = arith.constant 0 : i32
    return %arg0, %arg2, %arg1 : i32, i32, i32
  }
  func.func @transform_1(%arg0: i32, %arg1: i32, %arg2: i32) -> (i32, i32) {
    %c0_i32 = arith.constant 0 : i32
    %c0_i32_0 = arith.constant 0 : i32
    return %c0_i32, %arg2 : i32, i32
  }
  func.func @transform_2(%arg0: i32, %arg1: i32, %arg2: i32) -> (i32, i32) {
    %c0_i32 = arith.constant 0 : i32
    %c0_i32_0 = arith.constant 0 : i32
    %c0_i32_1 = arith.constant 0 : i32
    return %c0_i32, %c0_i32_0 : i32, i32
  }
  func.func @transform_3(%arg0: i32, %arg1: i32, %arg2: i32) -> (i32, i32, i32) {
    %c0_i32 = arith.constant 0 : i32
    %c0_i32_0 = arith.constant 0 : i32
    return %arg0, %c0_i32, %arg1 : i32, i32, i32
  }
}

</mosaic_0001>

<llo_original>
// kernel: tpu_custom_call.1
$region0: #{tpu_custom_call.1}
  #allocation0 [shape = 'u32[]', space=smem, size = 0x4, offset = 0x4, fixed_abs, tag = 'smem constant byte address 0x4 - core index']
  #allocation1 [shape = 'u32[144,128]{1,0:T(1,128)}', space=vmem, size = 0x12000, scoped, tag = 'internal scratch']
  #allocation2 [shape = 'f32[8,256]{1,0:T(8,128)}', space=vmem, size = 0x2000, scoped, tag = 'scratch operand']
  %s0 = inlined_call_operand.vmem [shape: f32[2,4,256], index: 0, kind: input, shape index: {}]
  %s1 = inlined_call_operand.vmem [shape: f32[8,4], index: 1, kind: input, shape index: {}]
  %s2 = inlined_call_operand.vmem [shape: f32[8,1], index: 2, kind: input, shape index: {}]
  %s3 = inlined_call_operand.hbm [shape: f32[2,8,256], index: 3, kind: output, shape index: {}]
  %s4 = sld [smem:[#allocation0]]
  $region53: #{tpu_custom_call.1} parent=0
    _
  %s6 = ssub.s32 1, %s4
  %s7 = scalar_select 0, %s6, %s4
  $region1: #{tpu_custom_call.1} parent=0
    #allocation3 [shape = 'u8[16384]{0}', space=vmem, size = 0x4000, scoped, tag = 'output window, operand 0']
    #allocation4 [shape = 's32[2]{0}', space=sflag, size = 0x8, scoped, tag = 'scoped memory for tpu_custom_call.1']
    %8 = vsyncpa [#allocation4], 0
    %s9 = scalar_lea.sflag [#allocation4], 1
    %10 = vsyncpa %s9, 0
    loop: start=0, step=1, limit=4
    $region2: #{tpu_custom_call.1} parent=1 // loop_pre_header
      _
    $region3: #{tpu_custom_call.1} parent=1 // loop_header
      %s12 = sphi 0, %s16
      %p13 = scmp.ge.s32.totalorder %s12, 4
      %s19 = sphi 0, %s38
      %s20 = sphi 0, %s34
      %s21 = sphi 0, %s30
      %s22 = sphi 0, %s19
      %s23 = sphi 0, %s20
      %s24 = sphi 0, %s21
      %s25 = sphi 0, %s22
      %s26 = sphi 0, %s23
      %s27 = sphi 0, %s24
      %s45 = sphi 0, %s47
      %s48 = sphi 0, %s45
      %s49 = sphi 0, %s48
      %s65 = sphi 0, %s49
      %s71 = sphi 0, %s73
      %s74 = sphi 0, %s71
      %s75 = sphi 0, %s74
      %s91 = sphi 0, %s75
      %s95 = sphi 0, %s95
      %s97 = sphi 0, %s95
      %s98 = sphi 0, %s97
      %s112 = sphi 0, %s98
      %s120 = sphi 0, %s122
      %s123 = sphi 0, %s120
      %s124 = sphi 0, %s123
      %s140 = sphi 0, %s124
    $region4: #{tpu_custom_call.1} parent=1 // loop_header_branch
      %15 = sbr.rel (%p13) target = $region8
    $region5: #{tpu_custom_call.1} parent=1 // loop_body
      %s17 = ssub.s32 %s12, 1
      %s18 = ssub.s32 %s12, 2
      %s28 = sadd.s32 1, %s21
      %p29 = scmp.ge.s32.totalorder %s28, 1
      %s30 = scalar_select %p29, 0, %s28
      %s31 = sadd.s32 1, %s20
      %s32 = scalar_select %p29, %s31, %s20
      %p33 = scmp.ge.s32.totalorder %s32, 1
      %s34 = scalar_select %p33, 0, %s32
      %s35 = sadd.s32 1, %s19
      %s36 = scalar_select %p33, %s35, %s19
      %p37 = scmp.ge.s32.totalorder %s36, 2
      %s38 = scalar_select %p37, 0, %s36
      %s39 = ssub.s32 %s19, %s38
      %s40 = ssub.s32 %s21, %s30
      %s41 = sor.u32 %s39, %s40
      %s42 = ssub.s32 %s20, %s34
      %s43 = sor.u32 %s41, %s42
      %p44 = scmp.eq.s32.totalorder %s43, 0
      %s46 = sadd.s32 %s45, 1
      %s47 = scalar_select %p44, %s45, %s46
      %p50 = pneg %p44
      %p51 = scmp.eq.s32.totalorder %s12, 1
      %p52 = por %p50, %p51
      %p53 = scmp.ne.s32.totalorder %s45, %s48
      %p54 = scmp.eq.s32.totalorder %s12, 0
      %p55 = por %p53, %p54
      %p56 = scmp.ne.s32.totalorder %s45, %s48
      %p57 = scmp.eq.s32.totalorder %s17, 1
      %p58 = por %p56, %p57
      %p59 = scmp.ne.s32.totalorder %s48, %s49
      %p60 = scmp.eq.s32.totalorder %s17, 0
      %p61 = por %p59, %p60
      %p62 = scmp.ne.s32.totalorder %s48, %s49
      %p63 = scmp.eq.s32.totalorder %s18, 1
      %p64 = por %p62, %p63
      %p66 = scmp.ne.s32.totalorder %s49, %s65
      %p67 = scmp.eq.s32.totalorder %s18, 0
      %p68 = por %p66, %p67
      %s69 = ssub.s32 %s21, %s30
      %p70 = scmp.eq.s32.totalorder %s69, 0
      %s72 = sadd.s32 %s71, 1
      %s73 = scalar_select %p70, %s71, %s72
      %p76 = pneg %p70
      %p77 = scmp.eq.s32.totalorder %s12, 1
      %p78 = por %p76, %p77
      %p79 = scmp.ne.s32.totalorder %s71, %s74
      %p80 = scmp.eq.s32.totalorder %s12, 0
      %p81 = por %p79, %p80
      %p82 = scmp.ne.s32.totalorder %s71, %s74
      %p83 = scmp.eq.s32.totalorder %s17, 1
      %p84 = por %p82, %p83
      %p85 = scmp.ne.s32.totalorder %s74, %s75
      %p86 = scmp.eq.s32.totalorder %s17, 0
      %p87 = por %p85, %p86
      %p88 = scmp.ne.s32.totalorder %s74, %s75
      %p89 = scmp.eq.s32.totalorder %s18, 1
      %p90 = por %p88, %p89
      %p92 = scmp.ne.s32.totalorder %s75, %s91
      %p93 = scmp.eq.s32.totalorder %s18, 0
      %p94 = por %p92, %p93
      %s96 = sadd.s32 %s95, 1
      %p99 = scmp.eq.s32.totalorder %s12, 1
      %p100 = scmp.ne.s32.totalorder %s95, %s97
      %p101 = scmp.eq.s32.totalorder %s12, 0
      %p102 = por %p100, %p101
      %p103 = scmp.ne.s32.totalorder %s95, %s97
      %p104 = scmp.eq.s32.totalorder %s17, 1
      %p105 = por %p103, %p104
      %p106 = scmp.ne.s32.totalorder %s97, %s98
      %p107 = scmp.eq.s32.totalorder %s17, 0
      %p108 = por %p106, %p107
      %p109 = scmp.ne.s32.totalorder %s97, %s98
      %p110 = scmp.eq.s32.totalorder %s18, 1
      %p111 = por %p109, %p110
      %p113 = scmp.ne.s32.totalorder %s98, %s112
      %p114 = scmp.eq.s32.totalorder %s18, 0
      %p115 = por %p113, %p114
      %s116 = ssub.s32 %s19, %s38
      %s117 = ssub.s32 %s20, %s34
      %s118 = sor.u32 %s116, %s117
      %p119 = scmp.eq.s32.totalorder %s118, 0
      %s121 = sadd.s32 %s120, 1
      %s122 = scalar_select %p119, %s120, %s121
      %p125 = pneg %p119
      %p126 = scmp.eq.s32.totalorder %s12, 1
      %p127 = por %p125, %p126
      %p128 = scmp.ne.s32.totalorder %s120, %s123
      %p129 = scmp.eq.s32.totalorder %s12, 0
      %p130 = por %p128, %p129
      %p131 = scmp.ne.s32.totalorder %s120, %s123
      %p132 = scmp.eq.s32.totalorder %s17, 1
      %p133 = por %p131, %p132
      %p134 = scmp.ne.s32.totalorder %s123, %s124
      %p135 = scmp.eq.s32.totalorder %s17, 0
      %p136 = por %p134, %p135
      %p137 = scmp.ne.s32.totalorder %s123, %s124
      %p138 = scmp.eq.s32.totalorder %s18, 1
      %p139 = por %p137, %p138
      %p141 = scmp.ne.s32.totalorder %s124, %s140
      %p142 = scmp.eq.s32.totalorder %s18, 0
      %p143 = por %p141, %p142
      %p144 = scmp.le.s32.totalorder 1, %s12
      %p145 = scmp.lt.s32.totalorder %s12, 3
      %p146 = pnand %p144, %p145
      %p147 = pneg %p146
      // Predicated region
      $region9: #{tpu_custom_call.1} parent=5 // pred_check
        _
      $region10: #{tpu_custom_call.1} parent=5 // pred_check_branch
        %149 = sbr.rel (%p146) target = $region12
      $region11: #{tpu_custom_call.1} parent=5 // pred_region
        %s150 = ssub.s32 %s12, 1
        // Predicated region
        $region13: #{tpu_custom_call.1} parent=11 // pred_check
          %p151 = pneg %p87
        $region14: #{tpu_custom_call.1} parent=11 // pred_check_branch
          %153 = sbr.rel (%p151) target = $region16
        $region15: #{tpu_custom_call.1} parent=11 // pred_region
          %p154 = scmp.lt.s32.totalorder %s24, 0
          %s155 = scalar_select %p154, %s24, 0
          %s156 = smul.addr %s155, 8
          %s157 = scalar_lea.vmem %s1, %s156
        $region16: #{tpu_custom_call.1} parent=11 // pred_fallthru
          _
        // Predicated region
        $region17: #{tpu_custom_call.1} parent=11 // pred_check
          %p158 = pneg %p108
        $region18: #{tpu_custom_call.1} parent=11 // pred_check_branch
          %160 = sbr.rel (%p158) target = $region20
        $region19: #{tpu_custom_call.1} parent=11 // pred_region
          _
        $region20: #{tpu_custom_call.1} parent=11 // pred_fallthru
          _
      $region12: #{tpu_custom_call.1} parent=5 // pred_fallthru
        _
      %p161 = scmp.lt.s32.totalorder %s12, 2
      // Predicated region
      $region21: #{tpu_custom_call.1} parent=5 // pred_check
        %p162 = pneg %p161
      $region22: #{tpu_custom_call.1} parent=5 // pred_check_branch
        %164 = sbr.rel (%p162) target = $region24
      $region23: #{tpu_custom_call.1} parent=5 // pred_region
        // Predicated region
        $region25: #{tpu_custom_call.1} parent=23 // pred_check
          %p165 = pneg %p55
        $region26: #{tpu_custom_call.1} parent=23 // pred_check_branch
          %167 = sbr.rel (%p165) target = $region28
        $region27: #{tpu_custom_call.1} parent=23 // pred_region
          %s168 = smul.u32 2, %s20
          %p169 = scmp.lt.s32.totalorder %s19, 1
          %s170 = scalar_select %p169, %s19, 1
          %p171 = scmp.lt.s32.totalorder %s21, 0
          %s172 = scalar_select %p171, %s21, 0
          %p173 = scmp.lt.s32.totalorder %s168, 1
          %s174 = scalar_select %p173, %s168, 1
          %s175 = smul.addr %s172, 2
          %s176 = sadd.s32 %s174, %s175
          %s177 = smul.addr %s170, 2
          %s178 = sadd.s32 %s176, %s177
          %s179 = smul.addr %s178, 4
          %s180 = scalar_lea.vmem %s0, %s179
          %s181 = smul.u32 2, %s20
        $region28: #{tpu_custom_call.1} parent=23 // pred_fallthru
          _
      $region24: #{tpu_custom_call.1} parent=5 // pred_fallthru
        _
      %p182 = scmp.le.s32.totalorder 1, %s12
      %p183 = scmp.lt.s32.totalorder %s12, 3
      %p184 = pnand %p182, %p183
      %p185 = pneg %p184
      // Predicated region
      $region29: #{tpu_custom_call.1} parent=5 // pred_check
        _
      $region30: #{tpu_custom_call.1} parent=5 // pred_check_branch
        %187 = sbr.rel (%p184) target = $region32
      $region31: #{tpu_custom_call.1} parent=5 // pred_region
        %s188 = ssub.s32 %s12, 1
        %s189 = smul.u32 2, %s23
        %p190 = scmp.lt.s32.totalorder %s22, 1
        %s191 = scalar_select %p190, %s22, 1
        %p192 = scmp.lt.s32.totalorder %s24, 0
        %s193 = scalar_select %p192, %s24, 0
        %p194 = scmp.lt.s32.totalorder %s189, 1
        %s195 = scalar_select %p194, %s189, 1
        %s196 = smul.addr %s193, 2
        %s197 = sadd.s32 %s195, %s196
        %s198 = smul.addr %s191, 2
        %s199 = sadd.s32 %s197, %s198
        %s200 = smul.addr %s199, 4
        %s201 = scalar_lea.vmem %s0, %s200
        %p202 = pneg %p61
        %p203 = pneg %p58
        %p204 = scmp.lt.s32.totalorder %s24, 0
        %s205 = scalar_select %p204, %s24, 0
        %s206 = smul.addr %s205, 8
        %s207 = scalar_lea.vmem %s1, %s206
        %p208 = pneg %p87
        %p209 = pneg %p84
        %p210 = pneg %p108
        %p211 = pneg %p105
        %p212 = pneg %p136
        %p213 = pneg %p133
        %s214 = sand.u32 %s123, 1
        %s215 = scalar_lea.sflag [#allocation4], %s214
        %s216 = sand.u32 %s123, 1
        %s217 = smul.addr %s216, 16
        %s218 = scalar_lea.vmem [#allocation3], %s217
        %s219 = smul.u32 2, %s23
        %p220 = scmp.lt.s32.totalorder %s22, 1
        %s221 = scalar_select %p220, %s22, 1
        %p222 = scmp.lt.s32.totalorder %s24, 0
        %s223 = scalar_select %p222, %s24, 0
        %p224 = scmp.lt.s32.totalorder %s219, 1
        %s225 = scalar_select %p224, %s219, 1
        %s226 = smul.addr %s223, 2
        %s227 = sadd.s32 %s225, %s226
        %s228 = smul.addr %s221, 2
        %s229 = sadd.s32 %s227, %s228
        %s230 = smul.addr %s229, 4
        %s231 = scalar_lea.vmem %s0, %s230
        %s232 = smul.u32 2, %s23
        %p233 = scmp.lt.s32.totalorder %s24, 0
        %s234 = scalar_select %p233, %s24, 0
        %s235 = smul.addr %s234, 8
        %s236 = scalar_lea.vmem %s1, %s235
        %s237 = smul.u32 2, %s23
        %p238 = scmp.eq.s32.totalorder %s24, 0
        // Predicated region
        $region33: #{tpu_custom_call.1} parent=31 // pred_check
          %p239 = pneg %p238
        $region34: #{tpu_custom_call.1} parent=31 // pred_check_branch
          %241 = sbr.rel (%p239) target = $region36
        $region35: #{tpu_custom_call.1} parent=31 // pred_region
          %242 = vst [vmem:[#allocation2] sm:$0xff] 0.0
          %243 = vst [vmem:[#allocation2 + $0x8] sm:$0xff] 0.0
        $region36: #{tpu_custom_call.1} parent=31 // pred_fallthru
          _
        %v244 = vld [vmem:[#allocation2] sm:$0xff]
        %v245 = vld [vmem:[#allocation2 + $0x8] sm:$0xff]
        %v246 = vld [vmem:[%s236] sm:$0xff]
        %v247 = vld [vmem:[%s231] sm:$0xff]
        %v249 = vcombine.high %v247, %v247
        %vm250 = vcmask 31744
        %v252 = vsel %vm250, %v246, 0
        %vm254 = vcmask 1043456
        %v255 = vsel %vm254, %v247, 0
        %v257 = vsel %vm254, %v249, 0
        %259 = vmatprep.subr.mxu0 %v257
        %260 = vmatpush1.msra.mxu0 %v255
        %261 = vmatprep.subr.mxu0 0.0
        %262 = vmatpush1.msra.mxu0 0.0
        %263 = vmatprep.subr.mxu0 0.0
        %264 = vmatpush1.msra.mxu0 0.0
        %265 = vmatprep.subr.mxu0 0.0
        %266 = vmatpush1.msra.mxu0 0.0
        %267 = vmatprep.subr.mxu0 0.0
        %268 = vmatpush1.msra.mxu0 0.0
        %269 = vmatprep.subr.mxu0 0.0
        %270 = vmatpush1.msra.mxu0 0.0
        %271 = vmatprep.subr.mxu0 0.0
        %272 = vmatpush1.msra.mxu0 0.0
        %273 = vmatprep.subr.mxu0 0.0
        %274 = vmatpush1.msra.mxu0 0.0
        %275 = vmatprep.subr.mxu0 0.0
        %276 = vmatpush1.msra.mxu0 0.0
        %277 = vmatprep.subr.mxu0 0.0
        %278 = vmatpush1.msra.mxu0 0.0
        %279 = vmatprep.subr.mxu0 0.0
        %280 = vmatpush1.msra.mxu0 0.0
        %281 = vmatprep.subr.mxu0 0.0
        %282 = vmatpush1.msra.mxu0 0.0
        %283 = vmatprep.subr.mxu0 0.0
        %284 = vmatpush1.msra.mxu0 0.0
        %285 = vmatprep.subr.mxu0 0.0
        %286 = vmatpush1.msra.mxu0 0.0
        %287 = vmatprep.subr.mxu0 0.0
        %288 = vmatpush1.msra.mxu0 0.0
        %289 = vmatprep.subr.mxu0 0.0
        %290 = vmatpush1.msra.mxu0 0.0
        %291 = vmatprep.subr.mxu0 0.0
        %292 = vmatpush1.msra.mxu0 0.0
        %293 = vmatprep.subr.mxu0 0.0
        %294 = vmatpush1.msra.mxu0 0.0
        %295 = vmatprep.subr.mxu0 0.0
        %296 = vmatpush1.msra.mxu0 0.0
        %297 = vmatprep.subr.mxu0 0.0
        %298 = vmatpush1.msra.mxu0 0.0
        %299 = vmatprep.subr.mxu0 0.0
        %300 = vmatpush1.msra.mxu0 0.0
        %301 = vmatprep.subr.mxu0 0.0
        %302 = vmatpush1.msra.mxu0 0.0
        %303 = vmatprep.subr.mxu0 0.0
        %304 = vmatpush1.msra.mxu0 0.0
        %305 = vmatprep.subr.mxu0 0.0
        %306 = vmatpush1.msra.mxu0 0.0
        %307 = vmatprep.subr.mxu0 0.0
        %308 = vmatpush1.msra.mxu0 0.0
        %309 = vmatprep.subr.mxu0 0.0
        %310 = vmatpush1.msra.mxu0 0.0
        %311 = vmatprep.subr.mxu0 0.0
        %312 = vmatpush1.msra.mxu0 0.0
        %313 = vmatprep.subr.mxu0 0.0
        %314 = vmatpush1.msra.mxu0 0.0
        %315 = vmatprep.subr.mxu0 0.0
        %316 = vmatpush1.msra.mxu0 0.0
        %317 = vmatprep.subr.mxu0 0.0
        %318 = vmatpush1.msra.mxu0 0.0
        %319 = vmatprep.subr.mxu0 0.0
        %320 = vmatpush1.msra.mxu0 0.0
        %321 = vmatprep.subr.mxu0 0.0
        %322 = vmatpush1.msra.mxu0 0.0
        %323 = vmatprep.mubr.f32.mxu0 0.0
        %324 = vmatmul.mubr.f32.gmra.mrb[0].mxu0 %v252
        %v325 = vpop.f32.mrb[0].mxu0
        %v326 = vadd.f32 0.0, %v325
        %v327 = vpop.f32.mrb[0].mxu0
        %v328 = vadd.f32 0.0, %v327
        %329 = vdwg.mxu0
        %v330 = vadd.f32 %v244, %v326
        %v331 = vadd.f32 %v245, %v328
        %332 = vst [vmem:[#allocation2] sm:$0xff] %v330
        %333 = vst [vmem:[#allocation2 + $0x8] sm:$0xff] %v331
        // Predicated region
        $region37: #{tpu_custom_call.1} parent=31 // pred_check
          %p334 = pneg %p238
        $region38: #{tpu_custom_call.1} parent=31 // pred_check_branch
          %336 = sbr.rel (%p334) target = $region40
        $region39: #{tpu_custom_call.1} parent=31 // pred_region
          %v337 = vld [vmem:[#allocation2] sm:$0xff]
          %v338 = vld [vmem:[#allocation2 + $0x8] sm:$0xff]
          %v339 = vld [vmem:[%s2] sm:$0xff]
          %341 = vset.pattern.permute.xlu0 0
          %342 = vperm.xlu0 %341, %v339
          %v343 = vpop.permute.xlu0 %342
          %v345 = vadd.f32 %v337, %v343
          %v346 = vadd.f32 %v338, %v343
          %347 = vst [vmem:[%s218] sm:$0xff] %v345
          %348 = vst [vmem:[%s218 + $0x8] sm:$0xff] %v346
        $region40: #{tpu_custom_call.1} parent=31 // pred_fallthru
          _
        %s349 = sand.u32 %s123, 1
        %s350 = scalar_lea.sflag [#allocation4], %s349
        %s351 = sand.u32 %s123, 1
        %s352 = smul.addr %s351, 16
        %s353 = scalar_lea.vmem [#allocation3], %s352
        // Predicated region
        $region41: #{tpu_custom_call.1} parent=31 // pred_check
          %p354 = pneg %p133
        $region42: #{tpu_custom_call.1} parent=31 // pred_check_branch
          %356 = sbr.rel (%p354) target = $region44
        $region43: #{tpu_custom_call.1} parent=31 // pred_region
          %s357 = smul.u32 2, %s23
          %s359 = ssub.s32 256, 256
          %360 = vsyncadd %s350, %s359
          %s361 = smul.addr %s22, 2
          %s362 = sadd.s32 %s357, %s361
          %s363 = smul.addr %s362, 128
          %s364 = scalar_lea.hbm %s3, %s363
          %s366 = sshll.u32 %s353, 4
          %s367 = int_to_ptr.vmem [resolvable:$true] %s366
          %369 = dma.vmem_to_hbm [thread:$0]  %s367, 256, %s364, %s350
        $region44: #{tpu_custom_call.1} parent=31 // pred_fallthru
          _
      $region32: #{tpu_custom_call.1} parent=5 // pred_fallthru
        _
      %p370 = scmp.le.s32.totalorder 2, %s12
      // Predicated region
      $region45: #{tpu_custom_call.1} parent=5 // pred_check
        %p371 = pneg %p370
      $region46: #{tpu_custom_call.1} parent=5 // pred_check_branch
        %373 = sbr.rel (%p371) target = $region48
      $region47: #{tpu_custom_call.1} parent=5 // pred_region
        %s374 = ssub.s32 %s12, 2
        // Predicated region
        $region49: #{tpu_custom_call.1} parent=47 // pred_check
          %p375 = pneg %p139
        $region50: #{tpu_custom_call.1} parent=47 // pred_check_branch
          %377 = sbr.rel (%p375) target = $region52
        $region51: #{tpu_custom_call.1} parent=47 // pred_region
          %s378 = sand.u32 %s124, 1
          %s379 = scalar_lea.sflag [#allocation4], %s378
          %s380 = sand.u32 %s124, 1
          %s381 = smul.addr %s380, 16
          %s382 = scalar_lea.vmem [#allocation3], %s381
          %383 = dma.done %s379, 256
        $region52: #{tpu_custom_call.1} parent=47 // pred_fallthru
          _
      $region48: #{tpu_custom_call.1} parent=5 // pred_fallthru
        _
    $region6: #{tpu_custom_call.1} parent=1 // loop_footer
      %s16 = sadd.s32 1, %s12
    $region7: #{tpu_custom_call.1} parent=1 // loop_footer_branch
      %11 = sbr.rel target = $region3
    $region8: #{tpu_custom_call.1} parent=1 // loop_exit
      _
    %384 = vsyncpa [#allocation4], 1
    %s385 = scalar_lea.sflag [#allocation4], 1
    %386 = vsyncpa %s385, 1

</llo_original>
